<compile_context>
chip_gen: v7x
topology: tpu7x:2x2x1
jax: 0.10.0
libtpu: 0.0.40
codegen_flags: <defaults>
</compile_context>

<pallas_src>
import functools

import jax
import jax.numpy as jnp
from jax.experimental import pallas as pl
from jax.experimental.pallas import tpu as pltpu

KH = KW = 3  # conv kernel size


def _round_up(a, m):
    return -(-a // m) * m


def conv3x3_kernel(w_ref, b_ref, x_ref, o_ref, *, img_w):
    # w_ref: SMEM f32[9]        flattened 3x3 weights
    # b_ref: SMEM f32[1]        bias
    # x_ref: VMEM [NB, H*W]     each row = one flattened image (f32 or bf16)
    # o_ref: VMEM f32[NB, H*W]  full-size output slab (halo cropped by caller)
    x = x_ref[...].astype(jnp.float32)   # single load; taps come from XLU rolls
    hw = x.shape[-1]

    # Fold bias into the accumulator init (saves one full-tile VPU add).
    acc = jnp.full(x.shape, b_ref[0], dtype=jnp.float32)

    for di in range(KH):
        # Tap (di, 0): shift the flattened image "left" by di*W.
        xr = x if di == 0 else pltpu.roll(x, hw - di * img_w, axis=1)
        for dj in range(KW):
            # Tap (di, dj): extra left-shift by dj within the same image.
            xs = xr if dj == 0 else pltpu.roll(xr, hw - dj, axis=1)
            acc = acc + w_ref[di * KW + dj] * xs

    o_ref[...] = acc


def conv2d_1x1x3x3(x, weight, bias, *, bf16_input=False):
    """x: [N,1,H,W], weight: [1,1,3,3], bias: [1] -> f32[N,1,H-2,W-2]."""
    N, C, H, W = x.shape
    assert C == 1 and H >= KH and W >= KW
    HW = H * W
    Ho, Wo = H - (KH - 1), W - (KW - 1)

    in_dtype = jnp.bfloat16 if bf16_input else jnp.float32
    row_bytes = HW * jnp.dtype(in_dtype).itemsize
    align = 16 if bf16_input else 8   # sublane tiling of the input block rows

    # ---- images-per-block (block row count) -------------------------------
    # TODO(synk): very large single images (H*W*4 >> 1 MiB) would need
    # per-image spatial tiling; not implemented here.
    if N * row_bytes <= (2 << 20):
        # Small problem: one full-array block, zero padding, single step.
        nblk = N
    else:
        # ~1 MiB of input per grid step (>= 2048 equivalent 128-lane rows).
        nblk = _round_up(max(1, (1 << 20) // row_bytes), align)
        # Keep at least 4 steps so v7x's two TensorCores each get >= 2 steps.
        nblk = min(nblk, _round_up(pl.cdiv(N, 4), align))
    steps = pl.cdiv(N, nblk)
    if nblk != N and steps > 1 and steps % 2 == 1:
        # Prefer an even step count (v7x megacore) by shrinking the block,
        # never by adding a garbage block.
        nblk = _round_up(pl.cdiv(N, steps + 1), align)
        steps = pl.cdiv(N, nblk)
    n_pad = steps * nblk

    # FREE reshape: [N,1,H,W] -> [N, H*W]; each row is one flattened image.
    x2 = x.reshape(N, HW).astype(in_dtype)
    if n_pad != N:
        x2 = jnp.pad(x2, ((0, n_pad - N), (0, 0)))

    w_flat = weight.reshape(KH * KW).astype(jnp.float32)
    b = bias.reshape(1).astype(jnp.float32)

    out2d = pl.pallas_call(
        functools.partial(conv3x3_kernel, img_w=W),
        out_shape=jax.ShapeDtypeStruct((n_pad, HW), jnp.float32),
        grid=(steps,),
        in_specs=[
            pl.BlockSpec(memory_space=pltpu.MemorySpace.SMEM),   # weights
            pl.BlockSpec(memory_space=pltpu.MemorySpace.SMEM),   # bias
            pl.BlockSpec((nblk, HW), lambda i: (i, 0)),
        ],
        out_specs=pl.BlockSpec((nblk, HW), lambda i: (i, 0)),
        compiler_params=pltpu.CompilerParams(
            dimension_semantics=("parallel",),
            vmem_limit_bytes=32 * 1024 * 1024,
        ),
    )(w_flat, b, x2)

    # FREE reshape back to NCHW, then a single strided crop of the halo.
    return out2d.reshape(n_pad, 1, H, W)[:N, :, :Ho, :Wo]


if __name__ == "__main__":
    key = jax.random.PRNGKey(0)
    k_x, k_w, k_b = jax.random.split(key, 3)

    # Shapes implied by the module: in_channels=1, 3x3 kernel.
    N, C, H, W = 8, 1, 16, 16
    x = jax.random.normal(k_x, (N, C, H, W), dtype=jnp.float32)

    # Deterministic parameter init (PyTorch-like uniform(-1/sqrt(fan_in), ..)).
    fan_in = C * KH * KW
    bound = 1.0 / jnp.sqrt(jnp.float32(fan_in))
    weight = jax.random.uniform(k_w, (1, 1, KH, KW), jnp.float32,
                                minval=-bound, maxval=bound)
    bias = jax.random.uniform(k_b, (1,), jnp.float32,
                              minval=-bound, maxval=bound)

    y = conv2d_1x1x3x3(x, weight, bias)
    y = jax.block_until_ready(y)

    # Sanity check against XLA's conv (same valid-conv semantics as PyTorch).
    y_ref = jax.lax.conv_general_dilated(
        x, weight, window_strides=(1, 1), padding="VALID",
        dimension_numbers=("NCHW", "OIHW", "NCHW")) + bias.reshape(1, 1, 1, 1)
    assert y.shape == (N, 1, H - 2, W - 2)
    assert jnp.allclose(y, y_ref, atol=1e-5, rtol=1e-5)

    print("KERNEL_OK")
</pallas_src>

<mosaic_0001>
module attributes {stable_mosaic.version = 11 : i64} {
  func.func @conv3x3_kernel(%arg0: i32, %arg1: memref<9xf32, #tpu.memory_space<smem>>, %arg2: memref<1xf32, #tpu.memory_space<smem>>, %arg3: memref<8x256xf32, #tpu.memory_space<vmem>>, %arg4: memref<8x256xf32, #tpu.memory_space<vmem>>) attributes {dimension_semantics = [#tpu.dimension_semantics<parallel>], iteration_bounds = array<i64: 1>, scalar_prefetch = 0 : i64, scratch_operands = 0 : i64, tpu.core_type = #tpu.core_type<tc>, window_params = [{transform_indices = @transform_0, window_bounds = array<i64: 9>}, {transform_indices = @transform_1, window_bounds = array<i64: 1>}, {transform_indices = @transform_2, window_bounds = array<i64: 8, 256>}, {transform_indices = @transform_3, window_bounds = array<i64: 8, 256>}]} {
    %c0 = arith.constant 0 : index
    %c0_0 = arith.constant 0 : index
    %0 = vector.load %arg3[%c0, %c0_0] : memref<8x256xf32, #tpu.memory_space<vmem>>, vector<8x256xf32>
    %c0_1 = arith.constant 0 : index
    %1 = memref.load %arg2[%c0_1] : memref<1xf32, #tpu.memory_space<smem>>
    %2 = vector.broadcast %1 : f32 to vector<8x256xf32>
    %c0_2 = arith.constant 0 : index
    %3 = memref.load %arg1[%c0_2] : memref<9xf32, #tpu.memory_space<smem>>
    %4 = vector.broadcast %3 : f32 to vector<8x256xf32>
    %5 = arith.mulf %4, %0 : vector<8x256xf32>
    %6 = arith.addf %2, %5 : vector<8x256xf32>
    %c255_i32 = arith.constant 255 : i32
    %7 = tpu.dynamic_rotate %0 by %c255_i32 dim 1 : vector<8x256xf32>, i32 -> vector<8x256xf32>
    %c1 = arith.constant 1 : index
    %8 = memref.load %arg1[%c1] : memref<9xf32, #tpu.memory_space<smem>>
    %9 = vector.broadcast %8 : f32 to vector<8x256xf32>
    %10 = arith.mulf %9, %7 : vector<8x256xf32>
    %11 = arith.addf %6, %10 : vector<8x256xf32>
    %c254_i32 = arith.constant 254 : i32
    %12 = tpu.dynamic_rotate %0 by %c254_i32 dim 1 : vector<8x256xf32>, i32 -> vector<8x256xf32>
    %c2 = arith.constant 2 : index
    %13 = memref.load %arg1[%c2] : memref<9xf32, #tpu.memory_space<smem>>
    %14 = vector.broadcast %13 : f32 to vector<8x256xf32>
    %15 = arith.mulf %14, %12 : vector<8x256xf32>
    %16 = arith.addf %11, %15 : vector<8x256xf32>
    %c240_i32 = arith.constant 240 : i32
    %17 = tpu.dynamic_rotate %0 by %c240_i32 dim 1 : vector<8x256xf32>, i32 -> vector<8x256xf32>
    %c3 = arith.constant 3 : index
    %18 = memref.load %arg1[%c3] : memref<9xf32, #tpu.memory_space<smem>>
    %19 = vector.broadcast %18 : f32 to vector<8x256xf32>
    %20 = arith.mulf %19, %17 : vector<8x256xf32>
    %21 = arith.addf %16, %20 : vector<8x256xf32>
    %c255_i32_3 = arith.constant 255 : i32
    %22 = tpu.dynamic_rotate %17 by %c255_i32_3 dim 1 : vector<8x256xf32>, i32 -> vector<8x256xf32>
    %c4 = arith.constant 4 : index
    %23 = memref.load %arg1[%c4] : memref<9xf32, #tpu.memory_space<smem>>
    %24 = vector.broadcast %23 : f32 to vector<8x256xf32>
    %25 = arith.mulf %24, %22 : vector<8x256xf32>
    %26 = arith.addf %21, %25 : vector<8x256xf32>
    %c254_i32_4 = arith.constant 254 : i32
    %27 = tpu.dynamic_rotate %17 by %c254_i32_4 dim 1 : vector<8x256xf32>, i32 -> vector<8x256xf32>
    %c5 = arith.constant 5 : index
    %28 = memref.load %arg1[%c5] : memref<9xf32, #tpu.memory_space<smem>>
    %29 = vector.broadcast %28 : f32 to vector<8x256xf32>
    %30 = arith.mulf %29, %27 : vector<8x256xf32>
    %31 = arith.addf %26, %30 : vector<8x256xf32>
    %c224_i32 = arith.constant 224 : i32
    %32 = tpu.dynamic_rotate %0 by %c224_i32 dim 1 : vector<8x256xf32>, i32 -> vector<8x256xf32>
    %c6 = arith.constant 6 : index
    %33 = memref.load %arg1[%c6] : memref<9xf32, #tpu.memory_space<smem>>
    %34 = vector.broadcast %33 : f32 to vector<8x256xf32>
    %35 = arith.mulf %34, %32 : vector<8x256xf32>
    %36 = arith.addf %31, %35 : vector<8x256xf32>
    %c255_i32_5 = arith.constant 255 : i32
    %37 = tpu.dynamic_rotate %32 by %c255_i32_5 dim 1 : vector<8x256xf32>, i32 -> vector<8x256xf32>
    %c7 = arith.constant 7 : index
    %38 = memref.load %arg1[%c7] : memref<9xf32, #tpu.memory_space<smem>>
    %39 = vector.broadcast %38 : f32 to vector<8x256xf32>
    %40 = arith.mulf %39, %37 : vector<8x256xf32>
    %41 = arith.addf %36, %40 : vector<8x256xf32>
    %c254_i32_6 = arith.constant 254 : i32
    %42 = tpu.dynamic_rotate %32 by %c254_i32_6 dim 1 : vector<8x256xf32>, i32 -> vector<8x256xf32>
    %c8 = arith.constant 8 : index
    %43 = memref.load %arg1[%c8] : memref<9xf32, #tpu.memory_space<smem>>
    %44 = vector.broadcast %43 : f32 to vector<8x256xf32>
    %45 = arith.mulf %44, %42 : vector<8x256xf32>
    %46 = arith.addf %41, %45 : vector<8x256xf32>
    %c0_7 = arith.constant 0 : index
    %c0_8 = arith.constant 0 : index
    %47 = vector.load %arg4[%c0_7, %c0_8] : memref<8x256xf32, #tpu.memory_space<vmem>>, vector<8x256xf32>
    tpu.vector_store %arg4[%c0_7, %c0_8], %46 {strides = array<i32>} : memref<8x256xf32, #tpu.memory_space<vmem>>, vector<8x256xf32>,
    return
  }
  func.func @transform_0(%arg0: i32) -> i32 {
    %c0_i32 = arith.constant 0 : i32
    %c0_i32_0 = arith.constant 0 : i32
    return %c0_i32 : i32
  }
  func.func @transform_1(%arg0: i32) -> i32 {
    %c0_i32 = arith.constant 0 : i32
    %c0_i32_0 = arith.constant 0 : i32
    return %c0_i32 : i32
  }
  func.func @transform_2(%arg0: i32) -> (i32, i32) {
    %c0_i32 = arith.constant 0 : i32
    %c0_i32_0 = arith.constant 0 : i32
    return %arg0, %c0_i32 : i32, i32
  }
  func.func @transform_3(%arg0: i32) -> (i32, i32) {
    %c0_i32 = arith.constant 0 : i32
    %c0_i32_0 = arith.constant 0 : i32
    return %arg0, %c0_i32 : i32, i32
  }
}

</mosaic_0001>

<llo_original>
// kernel: tpu_custom_call.1
$region0: #{tpu_custom_call.1}
  #allocation0 [shape = 'u32[]', space=smem, size = 0x4, offset = 0x4, fixed_abs, tag = 'smem constant byte address 0x4 - core index']
  #allocation1 [shape = 'u32[144,128]{1,0:T(1,128)}', space=vmem, size = 0x12000, scoped, tag = 'internal scratch']
  #allocation2 [shape = 'f32[1]{0:T(128)S(6)}', space=smem, size = 0x200, scoped, tag = 'scoped memory for tpu_custom_call.1']
  %s0 = inlined_call_operand.vmem [shape: f32[9], index: 0, kind: input, shape index: {}]
  %s1 = inlined_call_operand.<no memory space> [shape: f32[1], index: 1, kind: input, shape index: {}]
  %s2 = inlined_call_operand.hbm [shape: f32[8,256], index: 2, kind: input, shape index: {}]
  %s3 = inlined_call_operand.hbm [shape: f32[8,256], index: 3, kind: output, shape index: {}]
  %s4 = sld [smem:[#allocation0]]
  $region30: #{tpu_custom_call.1} parent=0
    _
  %s6 = ssub.s32 1, %s4
  %s7 = scalar_select 0, %s6, %s4
  %8 = sst [smem:[#allocation2]] %s1
  $region1: #{tpu_custom_call.1} parent=0
    #allocation3 [shape = 'u8[512]{0}', space=smem, size = 0x200, scoped, tag = 'input window, operand 0, single buffered']
    #allocation4 [shape = 's32[1]{0}', space=sflag, size = 0x4, scoped, tag = 'scoped memory for tpu_custom_call.1']
    #allocation5 [shape = 's32[1]{0}', space=sflag, size = 0x4, scoped, tag = 'scoped memory for tpu_custom_call.1']
    #allocation6 [shape = 's32[1]{0}', space=sflag, size = 0x4, scoped, tag = 'scoped memory for tpu_custom_call.1']
    #allocation7 [shape = 'u8[8192]{0}', space=vmem, size = 0x2000, scoped, tag = 'input window, operand 2, single buffered']
    #allocation8 [shape = 'u8[8192]{0}', space=vmem, size = 0x2000, scoped, tag = 'output window, operand 0, single buffered']
    %9 = vsyncpa [#allocation6], 0
    %10 = vsyncpa [#allocation4], 0
    %11 = vsyncpa [#allocation5], 0
    // Predicated region
    $region2: #{tpu_custom_call.1} parent=1 // pred_check
      _
    $region3: #{tpu_custom_call.1} parent=1 // pred_check_branch
      %13 = sbr.rel (0) target = $region5
    $region4: #{tpu_custom_call.1} parent=1 // pred_region
      %s15 = ssub.s32 16, 16
      %16 = vsyncadd [#allocation6], %s15
      %s18 = sshll.u32 %s0, 4
      %s19 = int_to_ptr.vmem [resolvable:$true] %s18
      %21 = dma.vmem_to_smem %s19, 16, [#allocation3], [#allocation6]
    $region5: #{tpu_custom_call.1} parent=1 // pred_fallthru
      _
    // Predicated region
    $region6: #{tpu_custom_call.1} parent=1 // pred_check
      _
    $region7: #{tpu_custom_call.1} parent=1 // pred_check_branch
      %23 = sbr.rel (0) target = $region9
    $region8: #{tpu_custom_call.1} parent=1 // pred_region
      _
    $region9: #{tpu_custom_call.1} parent=1 // pred_fallthru
      _
    // Predicated region
    $region10: #{tpu_custom_call.1} parent=1 // pred_check
      _
    $region11: #{tpu_custom_call.1} parent=1 // pred_check_branch
      %25 = sbr.rel (0) target = $region13
    $region12: #{tpu_custom_call.1} parent=1 // pred_region
      %s27 = ssub.s32 256, 256
      %28 = vsyncadd [#allocation4], %s27
      %s30 = sshll.u32 [#allocation7], 4
      %s31 = int_to_ptr.vmem [resolvable:$true] %s30
      %33 = dma.hbm_to_vmem [thread:$0]  %s2, 256, %s31, [#allocation4]
    $region13: #{tpu_custom_call.1} parent=1 // pred_fallthru
      _
    // Predicated region
    $region14: #{tpu_custom_call.1} parent=1 // pred_check
      _
    $region15: #{tpu_custom_call.1} parent=1 // pred_check_branch
      %35 = sbr.rel (0) target = $region17
    $region16: #{tpu_custom_call.1} parent=1 // pred_region
      %36 = dma.done [#allocation6], 16
    $region17: #{tpu_custom_call.1} parent=1 // pred_fallthru
      _
    // Predicated region
    $region18: #{tpu_custom_call.1} parent=1 // pred_check
      _
    $region19: #{tpu_custom_call.1} parent=1 // pred_check_branch
      %38 = sbr.rel (0) target = $region21
    $region20: #{tpu_custom_call.1} parent=1 // pred_region
      %39 = dma.done [#allocation4], 256
    $region21: #{tpu_custom_call.1} parent=1 // pred_fallthru
      _
    %40 = sfence
    %v41 = vld [vmem:[#allocation7] sm:$0xff]
    %v42 = vld [vmem:[#allocation7 + $0x8] sm:$0xff]
    %s43 = sld [smem:[#allocation2]]
    %v44 = vstv %s43
    %s45 = sld [smem:[#allocation3]]
    %v46 = vstv %s45
    %v47 = vmul.f32 %v46, %v41
    %v48 = vmul.f32 %v46, %v42
    %v49 = vadd.f32 %v44, %v47
    %v50 = vadd.f32 %v44, %v48
    %51 = vrot.lane.b32.xlu0 %v41, 127
    %v52 = vpop.permute.xlu0 %51
    %53 = vrot.lane.b32.xlu0 %v42, 127
    %v54 = vpop.permute.xlu0 %53
    %v55 = vlaneseq
    %v56 = vand.u32 %v55, 127
    %vm57 = vcmp.lt.s32.totalorder %v56, 127
    %v58 = vsel %vm57, %v52, %v54
    %v59 = vsel %vm57, %v54, %v52
    %s60 = sld [smem:[#allocation3 + $0x1]]
    %v61 = vstv %s60
    %v62 = vmul.f32 %v61, %v58
    %v63 = vmul.f32 %v61, %v59
    %v64 = vadd.f32 %v49, %v62
    %v65 = vadd.f32 %v50, %v63
    %66 = vrot.lane.b32.xlu0 %v41, 126
    %v67 = vpop.permute.xlu0 %66
    %68 = vrot.lane.b32.xlu0 %v42, 126
    %v69 = vpop.permute.xlu0 %68
    %vm70 = vcmp.lt.s32.totalorder %v56, 126
    %v71 = vsel %vm70, %v67, %v69
    %v72 = vsel %vm70, %v69, %v67
    %s73 = sld [smem:[#allocation3 + $0x2]]
    %v74 = vstv %s73
    %v75 = vmul.f32 %v74, %v71
    %v76 = vmul.f32 %v74, %v72
    %v77 = vadd.f32 %v64, %v75
    %v78 = vadd.f32 %v65, %v76
    %79 = vrot.lane.b32.xlu0 %v41, 112
    %v80 = vpop.permute.xlu0 %79
    %81 = vrot.lane.b32.xlu0 %v42, 112
    %v82 = vpop.permute.xlu0 %81
    %vm83 = vcmp.lt.s32.totalorder %v56, 112
    %v84 = vsel %vm83, %v80, %v82
    %v85 = vsel %vm83, %v82, %v80
    %s86 = sld [smem:[#allocation3 + $0x3]]
    %v87 = vstv %s86
    %v88 = vmul.f32 %v87, %v84
    %v89 = vmul.f32 %v87, %v85
    %v90 = vadd.f32 %v77, %v88
    %v91 = vadd.f32 %v78, %v89
    %92 = vrot.lane.b32.xlu0 %v84, 127
    %v93 = vpop.permute.xlu0 %92
    %94 = vrot.lane.b32.xlu0 %v85, 127
    %v95 = vpop.permute.xlu0 %94
    %v96 = vsel %vm57, %v93, %v95
    %v97 = vsel %vm57, %v95, %v93
    %s98 = sld [smem:[#allocation3 + $0x4]]
    %v99 = vstv %s98
    %v100 = vmul.f32 %v99, %v96
    %v101 = vmul.f32 %v99, %v97
    %v102 = vadd.f32 %v90, %v100
    %v103 = vadd.f32 %v91, %v101
    %104 = vrot.lane.b32.xlu0 %v84, 126
    %v105 = vpop.permute.xlu0 %104
    %106 = vrot.lane.b32.xlu0 %v85, 126
    %v107 = vpop.permute.xlu0 %106
    %v108 = vsel %vm70, %v105, %v107
    %v109 = vsel %vm70, %v107, %v105
    %s110 = sld [smem:[#allocation3 + $0x5]]
    %v111 = vstv %s110
    %v112 = vmul.f32 %v111, %v108
    %v113 = vmul.f32 %v111, %v109
    %v114 = vadd.f32 %v102, %v112
    %v115 = vadd.f32 %v103, %v113
    %116 = vrot.lane.b32.xlu0 %v41, 96
    %v117 = vpop.permute.xlu0 %116
    %118 = vrot.lane.b32.xlu0 %v42, 96
    %v119 = vpop.permute.xlu0 %118
    %vm120 = vcmp.lt.s32.totalorder %v56, 96
    %v121 = vsel %vm120, %v117, %v119
    %v122 = vsel %vm120, %v119, %v117
    %s123 = sld [smem:[#allocation3 + $0x6]]
    %v124 = vstv %s123
    %v125 = vmul.f32 %v124, %v121
    %v126 = vmul.f32 %v124, %v122
    %v127 = vadd.f32 %v114, %v125
    %v128 = vadd.f32 %v115, %v126
    %129 = vrot.lane.b32.xlu0 %v121, 127
    %v130 = vpop.permute.xlu0 %129
    %131 = vrot.lane.b32.xlu0 %v122, 127
    %v132 = vpop.permute.xlu0 %131
    %v133 = vsel %vm57, %v130, %v132
    %v134 = vsel %vm57, %v132, %v130
    %s135 = sld [smem:[#allocation3 + $0x7]]
    %v136 = vstv %s135
    %v137 = vmul.f32 %v136, %v133
    %v138 = vmul.f32 %v136, %v134
    %v139 = vadd.f32 %v127, %v137
    %v140 = vadd.f32 %v128, %v138
    %141 = vrot.lane.b32.xlu0 %v121, 126
    %v142 = vpop.permute.xlu0 %141
    %143 = vrot.lane.b32.xlu0 %v122, 126
    %v144 = vpop.permute.xlu0 %143
    %v145 = vsel %vm70, %v142, %v144
    %v146 = vsel %vm70, %v144, %v142
    %s147 = sld [smem:[#allocation3 + $0x8]]
    %v148 = vstv %s147
    %v149 = vmul.f32 %v148, %v145
    %v150 = vmul.f32 %v148, %v146
    %v151 = vadd.f32 %v139, %v149
    %v152 = vadd.f32 %v140, %v150
    %153 = vst [vmem:[#allocation8] sm:$0xff] %v151
    %154 = vst [vmem:[#allocation8 + $0x8] sm:$0xff] %v152
    // Predicated region
    $region22: #{tpu_custom_call.1} parent=1 // pred_check
      _
    $region23: #{tpu_custom_call.1} parent=1 // pred_check_branch
      %156 = sbr.rel (0) target = $region25
    $region24: #{tpu_custom_call.1} parent=1 // pred_region
      %s158 = ssub.s32 256, 256
      %159 = vsyncadd [#allocation5], %s158
      %s161 = sshll.u32 [#allocation8], 4
      %s162 = int_to_ptr.vmem [resolvable:$true] %s161
      %164 = dma.vmem_to_hbm [thread:$0]  %s162, 256, %s3, [#allocation5]
    $region25: #{tpu_custom_call.1} parent=1 // pred_fallthru
      _
    // Predicated region
    $region26: #{tpu_custom_call.1} parent=1 // pred_check
      _
    $region27: #{tpu_custom_call.1} parent=1 // pred_check_branch
      %166 = sbr.rel (0) target = $region29
    $region28: #{tpu_custom_call.1} parent=1 // pred_region
      %167 = dma.done [#allocation5], 256
    $region29: #{tpu_custom_call.1} parent=1 // pred_fallthru
      _
    %168 = vsyncpa [#allocation4], 1
    %169 = vsyncpa [#allocation5], 1
    %170 = vsyncpa [#allocation6], 1

</llo_original>
